<compile_context>
chip_gen: v7x
topology: tpu7x:2x2x1
jax: 0.10.0
libtpu: 0.0.40
codegen_flags: <defaults>
</compile_context>

<pallas_src>
import functools

import jax
import jax.numpy as jnp
from jax.experimental import pallas as pl
from jax.experimental.pallas import tpu as pltpu


def _round_up(a, b):
    return (a + b - 1) // b * b


def _gelu(x, approximate):
    if approximate:
        # tanh-form GELU: transcendental runs on the EUP slot (v6e/v7x advice).
        return jax.nn.gelu(x, approximate=True)
    # nn.GELU() default: 0.5 * x * (1 + erf(x / sqrt(2)))  (exact parity).
    return 0.5 * x * (1.0 + jax.lax.erf(x * 0.7071067811865476))


def dilconv_kernel(halo_ref, x_ref, wfold_ref, wheads_ref, res_ref, skip_ref,
                   *, kernel, dilation, chunk, approx_gelu):
    """One (batch row, time tile) per grid step; lane-chunked inside.

    halo_ref  : (1, n_t, C_in, halo_w)  per-batch left context (DMA'd once per b)
    x_ref     : (1, C_in, T_tile)       this tile of x (conv input AND residual)
    wfold_ref : (D, K*C_in)             dilated conv weight, taps folded into cols
    wheads_ref: (2, D)                  row 0 = compress 1x1, row 1 = skip 1x1
    res_ref   : (1, C_in, T_tile)
    skip_ref  : (1, 1, T_tile)
    """
    pad = dilation * (kernel - 1)
    t_tile = x_ref.shape[2]
    n_chunks = t_tile // chunk
    j = pl.program_id(1)

    w_fold = wfold_ref[...]           # (D, K*C_in)  tiny, loaded once per step
    w_heads = wheads_ref[...]         # (2, D)

    def emit(o, win):
        # win: (C_in, pad + chunk) causal window = input columns [o-pad, o+chunk).
        x_cur = win[:, pad:]                                        # (C_in, chunk)
        taps = [win[:, k * dilation: k * dilation + chunk] for k in range(kernel)]
        x_stack = jnp.concatenate(taps, axis=0)                     # (K*C_in, chunk)
        latent = jnp.dot(w_fold, x_stack,
                         preferred_element_type=jnp.float32)        # (D, chunk)
        latent = _gelu(latent, approx_gelu)
        heads = jnp.dot(w_heads, latent,
                        preferred_element_type=jnp.float32)         # (2, chunk)
        res_ref[0, :, o:o + chunk] = x_cur + heads[0:1, :]          # bcast over C_in
        # TODO(synk): nn.Dropout is identity in eval mode; train-mode RNG dropout
        # is not implemented here.
        skip_ref[0, :, o:o + chunk] = heads[1:2, :]

    # Chunk 0: left context comes from the per-batch halo (block index constant
    # over j -> no per-step halo DMA; j only selects rows of the resident block).
    x0 = x_ref[0, :, 0:chunk]
    if pad > 0:
        halo = halo_ref[0, j]                                       # (C_in, pad)
        emit(0, jnp.concatenate([halo, x0], axis=1))
    else:
        emit(0, x0)

    # Remaining chunks: left context lives inside the same x block.  Static
    # unroll (== lax.fori_loop(..., unroll=True)) keeps per-chunk temporaries
    # (taps, latent, heads) small instead of a whole-tile (D, T_tile) latent.
    for c in range(1, n_chunks):
        o = c * chunk
        emit(o, x_ref[0, :, o - pad: o + chunk])


def dil_conv_layer(x, w_conv, w_comp, w_skip, *, kernel, dilation,
                   t_tile_max=8192, chunk_lanes=512, approx_gelu=False):
    """DilConvLayer.forward (eval mode).  x: (N, C_in, T) f32.
       PyTorch Conv1d weight layouts: w_conv (D, C_in, K), w_comp (1, D, 1),
       w_skip (1, D, 1).  Returns (res, skip_out)."""
    n, c_in, t = x.shape
    d = w_conv.shape[0]
    pad = dilation * (kernel - 1)
    halo_w = max(pad, 1)

    x = x.astype(jnp.float32)

    # --- time tiling --------------------------------------------------------
    # Large lane-aligned tiles amortize the ~0.35us/step grid overhead; the
    # kernel chunks them internally, so VMEM/vreg pressure stays tiny on all of
    # v5e/v6e/v7x.  chunk >= pad so every chunk's left context fits in-block.
    chunk = max(chunk_lanes, _round_up(halo_w, 128))
    t_req = _round_up(t, 128)
    if t_req <= chunk:
        t_tile = t_req
        chunk = t_tile
    else:
        t_tile = min(_round_up(t_tile_max, chunk), _round_up(t_req, chunk))
        t_tile = max(t_tile, chunk)
    n_t = -(-t // t_tile)        # ceil; ragged last tile is masked by Pallas

    # --- tiny per-tile left halo (ReplicationPad1d) --------------------------
    # pad columns per (batch, tile); clipping indices to 0 reproduces the
    # replication padding of the first tile.  Never materializes a padded x.
    if pad > 0:
        pos = jnp.arange(n_t)[:, None] * t_tile - pad + jnp.arange(pad)[None, :]
        pos = jnp.clip(pos, 0, t - 1)
        halo = jnp.transpose(x[:, :, pos], (0, 2, 1, 3))   # (N, n_t, C_in, pad)
    else:
        halo = jnp.zeros((n, n_t, c_in, 1), jnp.float32)   # unused

    # --- weights: fold K dilated taps into a single (D, K*C_in) matmul -------
    w_fold = jnp.transpose(w_conv, (0, 2, 1)).reshape(d, kernel * c_in)
    w_fold = w_fold.astype(jnp.float32)
    w_heads = jnp.concatenate([w_comp.reshape(1, d), w_skip.reshape(1, d)],
                              axis=0).astype(jnp.float32)

    kfn = functools.partial(dilconv_kernel, kernel=kernel, dilation=dilation,
                            chunk=chunk, approx_gelu=approx_gelu)

    res, skip = pl.pallas_call(
        kfn,
        out_shape=(jax.ShapeDtypeStruct((n, c_in, t), jnp.float32),
                   jax.ShapeDtypeStruct((n, 1, t), jnp.float32)),
        grid_spec=pltpu.PrefetchScalarGridSpec(
            num_scalar_prefetch=0,
            grid=(n, n_t),
            in_specs=[
                # halo: block index constant over j -> one DMA per batch row.
                pl.BlockSpec((1, n_t, c_in, halo.shape[-1]),
                             lambda b, j: (b, 0, 0, 0)),
                pl.BlockSpec((1, c_in, t_tile), lambda b, j: (b, 0, j)),
                pl.BlockSpec((d, kernel * c_in), lambda b, j: (0, 0)),
                pl.BlockSpec((2, d), lambda b, j: (0, 0)),
            ],
            out_specs=[
                pl.BlockSpec((1, c_in, t_tile), lambda b, j: (b, 0, j)),
                pl.BlockSpec((1, 1, t_tile), lambda b, j: (b, 0, j)),
            ],
        ),
        compiler_params=pltpu.CompilerParams(
            dimension_semantics=("parallel", "parallel")),
    )(halo, x, w_fold, w_heads)

    return res, skip


def reference(x, w_conv, w_comp, w_skip, *, kernel, dilation):
    """Pure-JAX reference of the PyTorch forward (dropout = identity)."""
    pad = dilation * (kernel - 1)
    t = x.shape[2]
    if pad > 0:
        x_pad = jnp.concatenate([jnp.repeat(x[:, :, :1], pad, axis=2), x], axis=2)
    else:
        x_pad = x
    latent = sum(
        jnp.einsum('dc,nct->ndt', w_conv[:, :, k],
                   x_pad[:, :, k * dilation: k * dilation + t])
        for k in range(kernel))
    latent = 0.5 * latent * (1.0 + jax.lax.erf(latent / jnp.sqrt(2.0)))
    comp = jnp.einsum('od,ndt->not', w_comp[:, :, 0], latent)
    skip = jnp.einsum('od,ndt->not', w_skip[:, :, 0], latent)
    return x + comp, skip


if __name__ == "__main__":
    # Small shapes consistent with the module:
    #   channels_in=4, channels_dim=32, kernel=3, dilation=2, batch=2, seq=16
    N, C_IN, D, T = 2, 4, 32, 16
    KERNEL, DILATION = 3, 2

    key = jax.random.PRNGKey(0)
    kx, kw1, kw2, kw3 = jax.random.split(key, 4)

    x = jax.random.normal(kx, (N, C_IN, T), dtype=jnp.float32)
    w_conv = 0.1 * jax.random.normal(kw1, (D, C_IN, KERNEL), dtype=jnp.float32)
    w_comp = 0.1 * jax.random.normal(kw2, (1, D, 1), dtype=jnp.float32)
    w_skip = 0.1 * jax.random.normal(kw3, (1, D, 1), dtype=jnp.float32)

    res, skip = dil_conv_layer(x, w_conv, w_comp, w_skip,
                               kernel=KERNEL, dilation=DILATION)
    jax.block_until_ready((res, skip))

    res_ref, skip_ref = reference(x, w_conv, w_comp, w_skip,
                                  kernel=KERNEL, dilation=DILATION)
    assert res.shape == (N, C_IN, T) and skip.shape == (N, 1, T)
    assert jnp.allclose(res, res_ref, atol=1e-5, rtol=1e-5)
    assert jnp.allclose(skip, skip_ref, atol=1e-5, rtol=1e-5)

    # Exercise the multi-tile / multi-chunk / ragged-last-tile path too.
    T2 = 1111
    x2 = jax.random.normal(kx, (N, C_IN, T2), dtype=jnp.float32)
    r2, s2 = dil_conv_layer(x2, w_conv, w_comp, w_skip, kernel=KERNEL,
                            dilation=DILATION, t_tile_max=512, chunk_lanes=256)
    jax.block_until_ready((r2, s2))
    r2_ref, s2_ref = reference(x2, w_conv, w_comp, w_skip,
                               kernel=KERNEL, dilation=DILATION)
    assert jnp.allclose(r2, r2_ref, atol=1e-5, rtol=1e-5)
    assert jnp.allclose(s2, s2_ref, atol=1e-5, rtol=1e-5)

    print("KERNEL_OK")
</pallas_src>

<mosaic_0001>
module attributes {stable_mosaic.version = 11 : i64} {
  func.func @dilconv_kernel(%arg0: i32, %arg1: i32, %arg2: memref<1x1x4x4xf32, #tpu.memory_space<vmem>>, %arg3: memref<1x4x128xf32, #tpu.memory_space<vmem>>, %arg4: memref<32x12xf32, #tpu.memory_space<vmem>>, %arg5: memref<2x32xf32, #tpu.memory_space<vmem>>, %arg6: memref<1x4x128xf32, #tpu.memory_space<vmem>>, %arg7: memref<1x1x128xf32, #tpu.memory_space<vmem>>) attributes {dimension_semantics = [#tpu.dimension_semantics<parallel>, #tpu.dimension_semantics<parallel>], iteration_bounds = array<i64: 2, 1>, scalar_prefetch = 0 : i64, scratch_operands = 0 : i64, tpu.core_type = #tpu.core_type<tc>, window_params = [{transform_indices = @transform_0, window_bounds = array<i64: 1, 1, 4, 4>}, {transform_indices = @transform_1, window_bounds = array<i64: 1, 4, 128>}, {pipeline_mode = #tpu.pipeline_mode<synchronous>, transform_indices = @transform_2, window_bounds = array<i64: 32, 12>}, {pipeline_mode = #tpu.pipeline_mode<synchronous>, transform_indices = @transform_3, window_bounds = array<i64: 2, 32>}, {transform_indices = @transform_4, window_bounds = array<i64: 1, 4, 128>}, {transform_indices = @transform_5, window_bounds = array<i64: 1, 1, 128>}]} {
    %c0 = arith.constant 0 : index
    %c0_0 = arith.constant 0 : index
    %0 = vector.load %arg4[%c0, %c0_0] : memref<32x12xf32, #tpu.memory_space<vmem>>, vector<32x12xf32>
    %c0_1 = arith.constant 0 : index
    %c0_2 = arith.constant 0 : index
    %1 = vector.load %arg5[%c0_1, %c0_2] : memref<2x32xf32, #tpu.memory_space<vmem>>, vector<2x32xf32>
    %c0_3 = arith.constant 0 : index
    %c0_4 = arith.constant 0 : index
    %c0_5 = arith.constant 0 : index
    %2 = vector.load %arg3[%c0_3, %c0_4, %c0_5] : memref<1x4x128xf32, #tpu.memory_space<vmem>>, vector<1x4x128xf32>
    %3 = vector.shape_cast %2 : vector<1x4x128xf32> to vector<4x128xf32>
    %c0_6 = arith.constant 0 : index
    %4 = arith.index_cast %arg1 : i32 to index
    %c0_7 = arith.constant 0 : index
    %c0_8 = arith.constant 0 : index
    %5 = vector.load %arg2[%c0_6, %4, %c0_7, %c0_8] : memref<1x1x4x4xf32, #tpu.memory_space<vmem>>, vector<1x1x4x4xf32>
    %6 = vector.shape_cast %5 : vector<1x1x4x4xf32> to vector<4x4xf32>
    %7 = tpu.concatenate %6, %3 in 1 : vector<4x4xf32>, vector<4x128xf32> -> vector<4x132xf32>
    %8 = vector.extract_strided_slice %7 {offsets = [0, 4], sizes = [4, 128], strides = [1, 1]} : vector<4x132xf32> to vector<4x128xf32>
    %9 = vector.extract_strided_slice %7 {offsets = [0, 0], sizes = [4, 128], strides = [1, 1]} : vector<4x132xf32> to vector<4x128xf32>
    %10 = vector.extract_strided_slice %7 {offsets = [0, 2], sizes = [4, 128], strides = [1, 1]} : vector<4x132xf32> to vector<4x128xf32>
    %11 = vector.extract_strided_slice %7 {offsets = [0, 4], sizes = [4, 128], strides = [1, 1]} : vector<4x132xf32> to vector<4x128xf32>
    %12 = tpu.concatenate %9, %10, %11 in 0 : vector<4x128xf32>, vector<4x128xf32>, vector<4x128xf32> -> vector<12x128xf32>
    %cst = arith.constant dense<0.000000e+00> : vector<32x128xf32>
    %13 = tpu.matmul %0, %12, %cst {dimension_numbers = #tpu.dot_dimension_numbers<[1], [0], [0], [1], [0, 0, 1, 1], [], []>} : vector<32x12xf32>, vector<12x128xf32>, vector<32x128xf32> -> vector<32x128xf32>
    %cst_9 = arith.constant 5.000000e-01 : f32
    %14 = vector.broadcast %cst_9 : f32 to vector<32x128xf32>
    %15 = arith.mulf %14, %13 : vector<32x128xf32>
    %cst_10 = arith.constant 0.707106769 : f32
    %16 = vector.broadcast %cst_10 : f32 to vector<32x128xf32>
    %17 = arith.mulf %13, %16 : vector<32x128xf32>
    %18 = math.erf %17 : vector<32x128xf32>
    %cst_11 = arith.constant 1.000000e+00 : f32
    %19 = vector.broadcast %cst_11 : f32 to vector<32x128xf32>
    %20 = arith.addf %19, %18 : vector<32x128xf32>
    %21 = arith.mulf %15, %20 : vector<32x128xf32>
    %cst_12 = arith.constant dense<0.000000e+00> : vector<2x128xf32>
    %22 = tpu.matmul %1, %21, %cst_12 {dimension_numbers = #tpu.dot_dimension_numbers<[1], [0], [0], [1], [0, 0, 1, 1], [], []>} : vector<2x32xf32>, vector<32x128xf32>, vector<2x128xf32> -> vector<2x128xf32>
    %23 = vector.extract_strided_slice %22 {offsets = [0, 0], sizes = [1, 128], strides = [1, 1]} : vector<2x128xf32> to vector<1x128xf32>
    %24 = vector.broadcast %23 : vector<1x128xf32> to vector<4x128xf32>
    %25 = arith.addf %8, %24 : vector<4x128xf32>
    %c0_13 = arith.constant 0 : index
    %c0_14 = arith.constant 0 : index
    %c0_15 = arith.constant 0 : index
    %26 = vector.load %arg6[%c0_13, %c0_14, %c0_15] : memref<1x4x128xf32, #tpu.memory_space<vmem>>, vector<1x4x128xf32>
    %27 = vector.shape_cast %26 : vector<1x4x128xf32> to vector<4x128xf32>
    %28 = vector.shape_cast %25 : vector<4x128xf32> to vector<1x4x128xf32>
    tpu.vector_store %arg6[%c0_13, %c0_14, %c0_15], %28 {strides = array<i32>} : memref<1x4x128xf32, #tpu.memory_space<vmem>>, vector<1x4x128xf32>,
    %29 = vector.extract_strided_slice %22 {offsets = [1, 0], sizes = [1, 128], strides = [1, 1]} : vector<2x128xf32> to vector<1x128xf32>
    %c0_16 = arith.constant 0 : index
    %c0_17 = arith.constant 0 : index
    %c0_18 = arith.constant 0 : index
    %30 = vector.load %arg7[%c0_16, %c0_17, %c0_18] : memref<1x1x128xf32, #tpu.memory_space<vmem>>, vector<1x1x128xf32>
    %31 = vector.shape_cast %30 : vector<1x1x128xf32> to vector<1x128xf32>
    %32 = vector.shape_cast %29 : vector<1x128xf32> to vector<1x1x128xf32>
    tpu.vector_store %arg7[%c0_16, %c0_17, %c0_18], %32 {strides = array<i32>} : memref<1x1x128xf32, #tpu.memory_space<vmem>>, vector<1x1x128xf32>,
    return
  }
  func.func @transform_0(%arg0: i32, %arg1: i32) -> (i32, i32, i32, i32) {
    %c0_i32 = arith.constant 0 : i32
    %c0_i32_0 = arith.constant 0 : i32
    %c0_i32_1 = arith.constant 0 : i32
    %c0_i32_2 = arith.constant 0 : i32
    return %arg0, %c0_i32, %c0_i32_0, %c0_i32_1 : i32, i32, i32, i32
  }
  func.func @transform_1(%arg0: i32, %arg1: i32) -> (i32, i32, i32) {
    %c0_i32 = arith.constant 0 : i32
    %c0_i32_0 = arith.constant 0 : i32
    return %arg0, %c0_i32, %arg1 : i32, i32, i32
  }
  func.func @transform_2(%arg0: i32, %arg1: i32) -> (i32, i32) {
    %c0_i32 = arith.constant 0 : i32
    %c0_i32_0 = arith.constant 0 : i32
    %c0_i32_1 = arith.constant 0 : i32
    return %c0_i32, %c0_i32_0 : i32, i32
  }
  func.func @transform_3(%arg0: i32, %arg1: i32) -> (i32, i32) {
    %c0_i32 = arith.constant 0 : i32
    %c0_i32_0 = arith.constant 0 : i32
    %c0_i32_1 = arith.constant 0 : i32
    return %c0_i32, %c0_i32_0 : i32, i32
  }
  func.func @transform_4(%arg0: i32, %arg1: i32) -> (i32, i32, i32) {
    %c0_i32 = arith.constant 0 : i32
    %c0_i32_0 = arith.constant 0 : i32
    return %arg0, %c0_i32, %arg1 : i32, i32, i32
  }
  func.func @transform_5(%arg0: i32, %arg1: i32) -> (i32, i32, i32) {
    %c0_i32 = arith.constant 0 : i32
    %c0_i32_0 = arith.constant 0 : i32
    return %arg0, %c0_i32, %arg1 : i32, i32, i32
  }
}

</mosaic_0001>

<llo_original>
// kernel: tpu_custom_call.1
$region0: #{tpu_custom_call.1}
  #allocation0 [shape = 'u32[]', space=smem, size = 0x4, offset = 0x4, fixed_abs, tag = 'smem constant byte address 0x4 - core index']
  #allocation1 [shape = 'u32[144,128]{1,0:T(1,128)}', space=vmem, size = 0x12000, scoped, tag = 'internal scratch']
  %s0 = inlined_call_operand.vmem [shape: f32[2,1,4,4], index: 0, kind: input, shape index: {}]
  %s1 = inlined_call_operand.vmem [shape: f32[2,4,16], index: 1, kind: input, shape index: {}]
  %s2 = inlined_call_operand.vmem [shape: f32[32,12], index: 2, kind: input, shape index: {}]
  %s3 = inlined_call_operand.vmem [shape: f32[2,32], index: 3, kind: input, shape index: {}]
  %s4 = inlined_call_operand.hbm [shape: f32[2,4,16], index: 4, kind: output, shape index: {0}]
  %s5 = inlined_call_operand.hbm [shape: f32[2,1,16], index: 5, kind: output, shape index: {1}]
  %6 = xla_tuple %s4, %s5
  %s7 = sld [smem:[#allocation0]]
  $region57: #{tpu_custom_call.1} parent=0
    _
  %s9 = ssub.s32 1, %s7
  %s10 = scalar_select 0, %s9, %s7
  $region1: #{tpu_custom_call.1} parent=0
    #allocation2 [shape = 'u8[4096]{0}', space=vmem, size = 0x1000, scoped, tag = 'output window, operand 0']
    #allocation3 [shape = 's32[2]{0}', space=sflag, size = 0x8, scoped, tag = 'scoped memory for tpu_custom_call.1']
    #allocation4 [shape = 'u8[1024]{0}', space=vmem, size = 0x400, scoped, tag = 'output window, operand 1']
    #allocation5 [shape = 's32[2]{0}', space=sflag, size = 0x8, scoped, tag = 'scoped memory for tpu_custom_call.1']
    %11 = vsyncpa [#allocation3], 0
    %s12 = scalar_lea.sflag [#allocation3], 1
    %13 = vsyncpa %s12, 0
    %14 = vsyncpa [#allocation5], 0
    %s15 = scalar_lea.sflag [#allocation5], 1
    %16 = vsyncpa %s15, 0
    loop: start=0, step=1, limit=4
    $region2: #{tpu_custom_call.1} parent=1 // loop_pre_header
      _
    $region3: #{tpu_custom_call.1} parent=1 // loop_header
      %s18 = sphi 0, %s22
      %p19 = scmp.ge.s32.totalorder %s18, 4
      %s25 = sphi 0, %s37
      %s26 = sphi 0, %s33
      %s27 = sphi 0, %s25
      %s28 = sphi 0, %s26
      %s29 = sphi 0, %s27
      %s30 = sphi 0, %s28
      %s40 = sphi 0, %s42
      %s43 = sphi 0, %s40
      %s44 = sphi 0, %s43
      %s60 = sphi 0, %s44
      %s68 = sphi 0, %s70
      %s71 = sphi 0, %s68
      %s72 = sphi 0, %s71
      %s88 = sphi 0, %s72
      %s92 = sphi 0, %s92
      %s94 = sphi 0, %s92
      %s95 = sphi 0, %s94
      %s109 = sphi 0, %s95
      %s113 = sphi 0, %s113
      %s115 = sphi 0, %s113
      %s116 = sphi 0, %s115
      %s130 = sphi 0, %s116
      %s138 = sphi 0, %s140
      %s141 = sphi 0, %s138
      %s142 = sphi 0, %s141
      %s158 = sphi 0, %s142
      %s166 = sphi 0, %s168
      %s169 = sphi 0, %s166
      %s170 = sphi 0, %s169
      %s186 = sphi 0, %s170
    $region4: #{tpu_custom_call.1} parent=1 // loop_header_branch
      %21 = sbr.rel (%p19) target = $region8
    $region5: #{tpu_custom_call.1} parent=1 // loop_body
      %s23 = ssub.s32 %s18, 1
      %s24 = ssub.s32 %s18, 2
      %s31 = sadd.s32 1, %s26
      %p32 = scmp.ge.s32.totalorder %s31, 1
      %s33 = scalar_select %p32, 0, %s31
      %s34 = sadd.s32 1, %s25
      %s35 = scalar_select %p32, %s34, %s25
      %p36 = scmp.ge.s32.totalorder %s35, 2
      %s37 = scalar_select %p36, 0, %s35
      %s38 = ssub.s32 %s25, %s37
      %p39 = scmp.eq.s32.totalorder %s38, 0
      %s41 = sadd.s32 %s40, 1
      %s42 = scalar_select %p39, %s40, %s41
      %p45 = pneg %p39
      %p46 = scmp.eq.s32.totalorder %s18, 1
      %p47 = por %p45, %p46
      %p48 = scmp.ne.s32.totalorder %s40, %s43
      %p49 = scmp.eq.s32.totalorder %s18, 0
      %p50 = por %p48, %p49
      %p51 = scmp.ne.s32.totalorder %s40, %s43
      %p52 = scmp.eq.s32.totalorder %s23, 1
      %p53 = por %p51, %p52
      %p54 = scmp.ne.s32.totalorder %s43, %s44
      %p55 = scmp.eq.s32.totalorder %s23, 0
      %p56 = por %p54, %p55
      %p57 = scmp.ne.s32.totalorder %s43, %s44
      %p58 = scmp.eq.s32.totalorder %s24, 1
      %p59 = por %p57, %p58
      %p61 = scmp.ne.s32.totalorder %s44, %s60
      %p62 = scmp.eq.s32.totalorder %s24, 0
      %p63 = por %p61, %p62
      %s64 = ssub.s32 %s25, %s37
      %s65 = ssub.s32 %s26, %s33
      %s66 = sor.u32 %s64, %s65
      %p67 = scmp.eq.s32.totalorder %s66, 0
      %s69 = sadd.s32 %s68, 1
      %s70 = scalar_select %p67, %s68, %s69
      %p73 = pneg %p67
      %p74 = scmp.eq.s32.totalorder %s18, 1
      %p75 = por %p73, %p74
      %p76 = scmp.ne.s32.totalorder %s68, %s71
      %p77 = scmp.eq.s32.totalorder %s18, 0
      %p78 = por %p76, %p77
      %p79 = scmp.ne.s32.totalorder %s68, %s71
      %p80 = scmp.eq.s32.totalorder %s23, 1
      %p81 = por %p79, %p80
      %p82 = scmp.ne.s32.totalorder %s71, %s72
      %p83 = scmp.eq.s32.totalorder %s23, 0
      %p84 = por %p82, %p83
      %p85 = scmp.ne.s32.totalorder %s71, %s72
      %p86 = scmp.eq.s32.totalorder %s24, 1
      %p87 = por %p85, %p86
      %p89 = scmp.ne.s32.totalorder %s72, %s88
      %p90 = scmp.eq.s32.totalorder %s24, 0
      %p91 = por %p89, %p90
      %s93 = sadd.s32 %s92, 1
      %p96 = scmp.eq.s32.totalorder %s18, 1
      %p97 = scmp.ne.s32.totalorder %s92, %s94
      %p98 = scmp.eq.s32.totalorder %s18, 0
      %p99 = por %p97, %p98
      %p100 = scmp.ne.s32.totalorder %s92, %s94
      %p101 = scmp.eq.s32.totalorder %s23, 1
      %p102 = por %p100, %p101
      %p103 = scmp.ne.s32.totalorder %s94, %s95
      %p104 = scmp.eq.s32.totalorder %s23, 0
      %p105 = por %p103, %p104
      %p106 = scmp.ne.s32.totalorder %s94, %s95
      %p107 = scmp.eq.s32.totalorder %s24, 1
      %p108 = por %p106, %p107
      %p110 = scmp.ne.s32.totalorder %s95, %s109
      %p111 = scmp.eq.s32.totalorder %s24, 0
      %p112 = por %p110, %p111
      %s114 = sadd.s32 %s113, 1
      %p117 = scmp.eq.s32.totalorder %s18, 1
      %p118 = scmp.ne.s32.totalorder %s113, %s115
      %p119 = scmp.eq.s32.totalorder %s18, 0
      %p120 = por %p118, %p119
      %p121 = scmp.ne.s32.totalorder %s113, %s115
      %p122 = scmp.eq.s32.totalorder %s23, 1
      %p123 = por %p121, %p122
      %p124 = scmp.ne.s32.totalorder %s115, %s116
      %p125 = scmp.eq.s32.totalorder %s23, 0
      %p126 = por %p124, %p125
      %p127 = scmp.ne.s32.totalorder %s115, %s116
      %p128 = scmp.eq.s32.totalorder %s24, 1
      %p129 = por %p127, %p128
      %p131 = scmp.ne.s32.totalorder %s116, %s130
      %p132 = scmp.eq.s32.totalorder %s24, 0
      %p133 = por %p131, %p132
      %s134 = ssub.s32 %s25, %s37
      %s135 = ssub.s32 %s26, %s33
      %s136 = sor.u32 %s134, %s135
      %p137 = scmp.eq.s32.totalorder %s136, 0
      %s139 = sadd.s32 %s138, 1
      %s140 = scalar_select %p137, %s138, %s139
      %p143 = pneg %p137
      %p144 = scmp.eq.s32.totalorder %s18, 1
      %p145 = por %p143, %p144
      %p146 = scmp.ne.s32.totalorder %s138, %s141
      %p147 = scmp.eq.s32.totalorder %s18, 0
      %p148 = por %p146, %p147
      %p149 = scmp.ne.s32.totalorder %s138, %s141
      %p150 = scmp.eq.s32.totalorder %s23, 1
      %p151 = por %p149, %p150
      %p152 = scmp.ne.s32.totalorder %s141, %s142
      %p153 = scmp.eq.s32.totalorder %s23, 0
      %p154 = por %p152, %p153
      %p155 = scmp.ne.s32.totalorder %s141, %s142
      %p156 = scmp.eq.s32.totalorder %s24, 1
      %p157 = por %p155, %p156
      %p159 = scmp.ne.s32.totalorder %s142, %s158
      %p160 = scmp.eq.s32.totalorder %s24, 0
      %p161 = por %p159, %p160
      %s162 = ssub.s32 %s25, %s37
      %s163 = ssub.s32 %s26, %s33
      %s164 = sor.u32 %s162, %s163
      %p165 = scmp.eq.s32.totalorder %s164, 0
      %s167 = sadd.s32 %s166, 1
      %s168 = scalar_select %p165, %s166, %s167
      %p171 = pneg %p165
      %p172 = scmp.eq.s32.totalorder %s18, 1
      %p173 = por %p171, %p172
      %p174 = scmp.ne.s32.totalorder %s166, %s169
      %p175 = scmp.eq.s32.totalorder %s18, 0
      %p176 = por %p174, %p175
      %p177 = scmp.ne.s32.totalorder %s166, %s169
      %p178 = scmp.eq.s32.totalorder %s23, 1
      %p179 = por %p177, %p178
      %p180 = scmp.ne.s32.totalorder %s169, %s170
      %p181 = scmp.eq.s32.totalorder %s23, 0
      %p182 = por %p180, %p181
      %p183 = scmp.ne.s32.totalorder %s169, %s170
      %p184 = scmp.eq.s32.totalorder %s24, 1
      %p185 = por %p183, %p184
      %p187 = scmp.ne.s32.totalorder %s170, %s186
      %p188 = scmp.eq.s32.totalorder %s24, 0
      %p189 = por %p187, %p188
      %p190 = scmp.le.s32.totalorder 1, %s18
      %p191 = scmp.lt.s32.totalorder %s18, 3
      %p192 = pnand %p190, %p191
      %p193 = pneg %p192
      // Predicated region
      $region9: #{tpu_custom_call.1} parent=5 // pred_check
        _
      $region10: #{tpu_custom_call.1} parent=5 // pred_check_branch
        %195 = sbr.rel (%p192) target = $region12
      $region11: #{tpu_custom_call.1} parent=5 // pred_region
        %s196 = ssub.s32 %s18, 1
        // Predicated region
        $region13: #{tpu_custom_call.1} parent=11 // pred_check
          %p197 = pneg %p105
        $region14: #{tpu_custom_call.1} parent=11 // pred_check_branch
          %199 = sbr.rel (%p197) target = $region16
        $region15: #{tpu_custom_call.1} parent=11 // pred_region
          _
        $region16: #{tpu_custom_call.1} parent=11 // pred_fallthru
          _
        // Predicated region
        $region17: #{tpu_custom_call.1} parent=11 // pred_check
          %p200 = pneg %p126
        $region18: #{tpu_custom_call.1} parent=11 // pred_check_branch
          %202 = sbr.rel (%p200) target = $region20
        $region19: #{tpu_custom_call.1} parent=11 // pred_region
          _
        $region20: #{tpu_custom_call.1} parent=11 // pred_fallthru
          _
      $region12: #{tpu_custom_call.1} parent=5 // pred_fallthru
        _
      %p203 = scmp.lt.s32.totalorder %s18, 2
      // Predicated region
      $region21: #{tpu_custom_call.1} parent=5 // pred_check
        %p204 = pneg %p203
      $region22: #{tpu_custom_call.1} parent=5 // pred_check_branch
        %206 = sbr.rel (%p204) target = $region24
      $region23: #{tpu_custom_call.1} parent=5 // pred_region
        // Predicated region
        $region25: #{tpu_custom_call.1} parent=23 // pred_check
          %p207 = pneg %p50
        $region26: #{tpu_custom_call.1} parent=23 // pred_check_branch
          %209 = sbr.rel (%p207) target = $region28
        $region27: #{tpu_custom_call.1} parent=23 // pred_region
          %p210 = scmp.lt.s32.totalorder %s25, 1
          %s211 = scalar_select %p210, %s25, 1
          %s212 = smul.addr %s211, 4
          %s213 = scalar_lea.vmem %s0, %s212
        $region28: #{tpu_custom_call.1} parent=23 // pred_fallthru
          _
        // Predicated region
        $region29: #{tpu_custom_call.1} parent=23 // pred_check
          %p214 = pneg %p78
        $region30: #{tpu_custom_call.1} parent=23 // pred_check_branch
          %216 = sbr.rel (%p214) target = $region32
        $region31: #{tpu_custom_call.1} parent=23 // pred_region
          %p217 = scmp.lt.s32.totalorder %s25, 1
          %s218 = scalar_select %p217, %s25, 1
          %p219 = scmp.lt.s32.totalorder %s26, 0
          %s220 = scalar_select %p219, %s26, 0
          %s221 = sadd.s32 %s220, %s218
          %s222 = smul.addr %s221, 4
          %s223 = scalar_lea.vmem %s1, %s222
        $region32: #{tpu_custom_call.1} parent=23 // pred_fallthru
          _
      $region24: #{tpu_custom_call.1} parent=5 // pred_fallthru
        _
      %p224 = scmp.le.s32.totalorder 1, %s18
      %p225 = scmp.lt.s32.totalorder %s18, 3
      %p226 = pnand %p224, %p225
      %p227 = pneg %p226
      // Predicated region
      $region33: #{tpu_custom_call.1} parent=5 // pred_check
        _
      $region34: #{tpu_custom_call.1} parent=5 // pred_check_branch
        %229 = sbr.rel (%p226) target = $region36
      $region35: #{tpu_custom_call.1} parent=5 // pred_region
        %s230 = ssub.s32 %s18, 1
        %p231 = scmp.lt.s32.totalorder %s27, 1
        %s232 = scalar_select %p231, %s27, 1
        %s233 = smul.addr %s232, 4
        %s234 = scalar_lea.vmem %s0, %s233
        %p235 = pneg %p56
        %p236 = pneg %p53
        %p237 = scmp.lt.s32.totalorder %s27, 1
        %s238 = scalar_select %p237, %s27, 1
        %p239 = scmp.lt.s32.totalorder %s28, 0
        %s240 = scalar_select %p239, %s28, 0
        %s241 = sadd.s32 %s240, %s238
        %s242 = smul.addr %s241, 4
        %s243 = scalar_lea.vmem %s1, %s242
        %p244 = pneg %p84
        %p245 = pneg %p81
        %p246 = pneg %p105
        %p247 = pneg %p102
        %p248 = pneg %p126
        %p249 = pneg %p123
        %p250 = pneg %p154
        %p251 = pneg %p151
        %s252 = sand.u32 %s141, 1
        %s253 = scalar_lea.sflag [#allocation3], %s252
        %s254 = sand.u32 %s141, 1
        %s255 = smul.addr %s254, 4
        %s256 = scalar_lea.vmem [#allocation2], %s255
        %p257 = pneg %p182
        %p258 = pneg %p179
        %s259 = sand.u32 %s169, 1
        %s260 = scalar_lea.sflag [#allocation5], %s259
        %s261 = sand.u32 %s169, 1
        %s262 = scalar_lea.vmem [#allocation4], %s261
        %p263 = scmp.lt.s32.totalorder %s27, 1
        %s264 = scalar_select %p263, %s27, 1
        %s265 = smul.addr %s264, 4
        %s266 = scalar_lea.vmem %s0, %s265
        %p267 = scmp.lt.s32.totalorder %s27, 1
        %s268 = scalar_select %p267, %s27, 1
        %p269 = scmp.lt.s32.totalorder %s28, 0
        %s270 = scalar_select %p269, %s28, 0
        %s271 = sadd.s32 %s270, %s268
        %s272 = smul.addr %s271, 4
        %s273 = scalar_lea.vmem %s1, %s272
        %v274 = vld [vmem:[%s2] sm:$0xff]
        %v275 = vld [vmem:[%s2 + $0x8] sm:$0xff]
        %v276 = vld [vmem:[%s2 + $0x10] sm:$0xff]
        %v277 = vld [vmem:[%s2 + $0x18] sm:$0xff]
        %v278 = vld [vmem:[%s3] sm:$0x3]
        %v279 = vld [vmem:[%s273] sm:$0xf]
        %s280 = smul.u32 %s28, 4
        %s281 = scalar_lea.vmem %s266, %s280
        %v282 = vld [vmem:[%s281] sm:$0xf]
        %284 = vrot.lane.b32.xlu0 %v279, 4
        %v285 = vpop.permute.xlu0 %284
        %vm287 = vcmask 31744
        %v288 = vsel %vm287, %v282, %v285
        %v290 = vrot.slane %v288, 4
        %v291 = vrot.slane %v285, 4
        %292 = vrot.lane.b32.xlu0 %v290, 126
        %v293 = vpop.permute.xlu0 %292
        %294 = vrot.lane.b32.xlu0 %v291, 126
        %v295 = vpop.permute.xlu0 %294
        %vm296 = vcmask 1031168
        %v297 = vsel %vm296, %v293, %v295
        %299 = vrot.lane.b32.xlu0 %v288, 124
        %v300 = vpop.permute.xlu0 %299
        %301 = vrot.lane.b32.xlu0 %v285, 124
        %v302 = vpop.permute.xlu0 %301
        %vm303 = vcmask 1014784
        %v304 = vsel %vm303, %v300, %v302
        %vm305 = vcmask 1043456
        %v306 = vsel %vm305, %v288, %v297
        %vm307 = vcmask 97280
        %v309 = vsel %vm307, %v274, 0
        %v312 = vsel %vm307, %v275, 0
        %v315 = vsel %vm307, %v276, 0
        %v318 = vsel %vm307, %v277, 0
        %v320 = vsel %vm305, %v304, 0
        %322 = vmatprep.subr.mxu0 0.0
        %323 = vmatpush1.msra.mxu0 %v306
        %324 = vmatprep.subr.mxu0 0.0
        %325 = vmatpush1.msra.mxu0 %v320
        %326 = vmatprep.subr.mxu0 0.0
        %327 = vmatpush1.msra.mxu0 0.0
        %328 = vmatprep.subr.mxu0 0.0
        %329 = vmatpush1.msra.mxu0 0.0
        %330 = vmatprep.subr.mxu0 0.0
        %331 = vmatpush1.msra.mxu0 0.0
        %332 = vmatprep.subr.mxu0 0.0
        %333 = vmatpush1.msra.mxu0 0.0
        %334 = vmatprep.subr.mxu0 0.0
        %335 = vmatpush1.msra.mxu0 0.0
        %336 = vmatprep.subr.mxu0 0.0
        %337 = vmatpush1.msra.mxu0 0.0
        %338 = vmatprep.subr.mxu0 0.0
        %339 = vmatpush1.msra.mxu0 0.0
        %340 = vmatprep.subr.mxu0 0.0
        %341 = vmatpush1.msra.mxu0 0.0
        %342 = vmatprep.subr.mxu0 0.0
        %343 = vmatpush1.msra.mxu0 0.0
        %344 = vmatprep.subr.mxu0 0.0
        %345 = vmatpush1.msra.mxu0 0.0
        %346 = vmatprep.subr.mxu0 0.0
        %347 = vmatpush1.msra.mxu0 0.0
        %348 = vmatprep.subr.mxu0 0.0
        %349 = vmatpush1.msra.mxu0 0.0
        %350 = vmatprep.subr.mxu0 0.0
        %351 = vmatpush1.msra.mxu0 0.0
        %352 = vmatprep.subr.mxu0 0.0
        %353 = vmatpush1.msra.mxu0 0.0
        %354 = vmatprep.subr.mxu0 0.0
        %355 = vmatpush1.msra.mxu0 0.0
        %356 = vmatprep.subr.mxu0 0.0
        %357 = vmatpush1.msra.mxu0 0.0
        %358 = vmatprep.subr.mxu0 0.0
        %359 = vmatpush1.msra.mxu0 0.0
        %360 = vmatprep.subr.mxu0 0.0
        %361 = vmatpush1.msra.mxu0 0.0
        %362 = vmatprep.subr.mxu0 0.0
        %363 = vmatpush1.msra.mxu0 0.0
        %364 = vmatprep.subr.mxu0 0.0
        %365 = vmatpush1.msra.mxu0 0.0
        %366 = vmatprep.subr.mxu0 0.0
        %367 = vmatpush1.msra.mxu0 0.0
        %368 = vmatprep.subr.mxu0 0.0
        %369 = vmatpush1.msra.mxu0 0.0
        %370 = vmatprep.subr.mxu0 0.0
        %371 = vmatpush1.msra.mxu0 0.0
        %372 = vmatprep.subr.mxu0 0.0
        %373 = vmatpush1.msra.mxu0 0.0
        %374 = vmatprep.subr.mxu0 0.0
        %375 = vmatpush1.msra.mxu0 0.0
        %376 = vmatprep.subr.mxu0 0.0
        %377 = vmatpush1.msra.mxu0 0.0
        %378 = vmatprep.subr.mxu0 0.0
        %379 = vmatpush1.msra.mxu0 0.0
        %380 = vmatprep.subr.mxu0 0.0
        %381 = vmatpush1.msra.mxu0 0.0
        %382 = vmatprep.subr.mxu0 0.0
        %383 = vmatpush1.msra.mxu0 0.0
        %384 = vmatprep.subr.mxu0 0.0
        %385 = vmatpush1.msra.mxu0 0.0
        %386 = vmatprep.mubr.f32.mxu0 0.0
        %387 = vmatmul.mubr.f32.gmra.mrb[0].mxu0 %v309
        %v388 = vpop.f32.mrb[0].mxu0
        %v389 = vadd.f32 0.0, %v388
        %v390 = vpop.f32.mrb[0].mxu0
        %391 = vmatprep.mubr.f32.mxu0 0.0
        %392 = vmatmul.mubr.f32.gmra.mrb[0].mxu0 %v312
        %v393 = vpop.f32.mrb[0].mxu0
        %v394 = vadd.f32 0.0, %v393
        %v395 = vpop.f32.mrb[0].mxu0
        %396 = vmatprep.mubr.f32.mxu0 0.0
        %397 = vmatmul.mubr.f32.gmra.mrb[0].mxu0 %v315
        %v398 = vpop.f32.mrb[0].mxu0
        %v399 = vadd.f32 0.0, %v398
        %v400 = vpop.f32.mrb[0].mxu0
        %401 = vmatprep.mubr.f32.mxu0 0.0
        %402 = vmatmul.mubr.f32.gmra.mrb[0].mxu0 %v318
        %v403 = vpop.f32.mrb[0].mxu0
        %v404 = vadd.f32 0.0, %v403
        %v405 = vpop.f32.mrb[0].mxu0
        %406 = vdwg.mxu0
        %v407 = vmul.f32 %v389, 0.5
        %v408 = vmul.f32 %v394, 0.5
        %v409 = vmul.f32 %v399, 0.5
        %v410 = vmul.f32 %v404, 0.5
        %v411 = vmul.f32 %v389, 0.70710677
        %v412 = vmul.f32 %v394, 0.70710677
        %v413 = vmul.f32 %v399, 0.70710677
        %v414 = vmul.f32 %v404, 0.70710677
        %v415 = verf.f32.pop %v411
        %v416 = verf.f32.pop %v412
        %v417 = verf.f32.pop %v413
        %v418 = verf.f32.pop %v414
        %v419 = vadd.f32 %v415, 1.0
        %v420 = vadd.f32 %v416, 1.0
        %v421 = vadd.f32 %v417, 1.0
        %v422 = vadd.f32 %v418, 1.0
        %v423 = vmul.f32 %v407, %v419
        %v424 = vmul.f32 %v408, %v420
        %v425 = vmul.f32 %v409, %v421
        %v426 = vmul.f32 %v410, %v422
        %vm427 = vcmask 261120
        %v429 = vsel %vm427, %v278, 0
        %431 = vmatprep.subr.mxu0 0.0
        %432 = vmatpush1.msra.mxu0 %v423
        %433 = vmatprep.subr.mxu0 0.0
        %434 = vmatpush1.msra.mxu0 %v424
        %435 = vmatprep.subr.mxu0 0.0
        %436 = vmatpush1.msra.mxu0 %v425
        %437 = vmatprep.subr.mxu0 0.0
        %438 = vmatpush1.msra.mxu0 %v426
        %439 = vmatprep.subr.mxu0 0.0
        %440 = vmatpush1.msra.mxu0 0.0
        %441 = vmatprep.subr.mxu0 0.0
        %442 = vmatpush1.msra.mxu0 0.0
        %443 = vmatprep.subr.mxu0 0.0
        %444 = vmatpush1.msra.mxu0 0.0
        %445 = vmatprep.subr.mxu0 0.0
        %446 = vmatpush1.msra.mxu0 0.0
        %447 = vmatprep.subr.mxu0 0.0
        %448 = vmatpush1.msra.mxu0 0.0
        %449 = vmatprep.subr.mxu0 0.0
        %450 = vmatpush1.msra.mxu0 0.0
        %451 = vmatprep.subr.mxu0 0.0
        %452 = vmatpush1.msra.mxu0 0.0
        %453 = vmatprep.subr.mxu0 0.0
        %454 = vmatpush1.msra.mxu0 0.0
        %455 = vmatprep.subr.mxu0 0.0
        %456 = vmatpush1.msra.mxu0 0.0
        %457 = vmatprep.subr.mxu0 0.0
        %458 = vmatpush1.msra.mxu0 0.0
        %459 = vmatprep.subr.mxu0 0.0
        %460 = vmatpush1.msra.mxu0 0.0
        %461 = vmatprep.subr.mxu0 0.0
        %462 = vmatpush1.msra.mxu0 0.0
        %463 = vmatprep.subr.mxu0 0.0
        %464 = vmatpush1.msra.mxu0 0.0
        %465 = vmatprep.subr.mxu0 0.0
        %466 = vmatpush1.msra.mxu0 0.0
        %467 = vmatprep.subr.mxu0 0.0
        %468 = vmatpush1.msra.mxu0 0.0
        %469 = vmatprep.subr.mxu0 0.0
        %470 = vmatpush1.msra.mxu0 0.0
        %471 = vmatprep.subr.mxu0 0.0
        %472 = vmatpush1.msra.mxu0 0.0
        %473 = vmatprep.subr.mxu0 0.0
        %474 = vmatpush1.msra.mxu0 0.0
        %475 = vmatprep.subr.mxu0 0.0
        %476 = vmatpush1.msra.mxu0 0.0
        %477 = vmatprep.subr.mxu0 0.0
        %478 = vmatpush1.msra.mxu0 0.0
        %479 = vmatprep.subr.mxu0 0.0
        %480 = vmatpush1.msra.mxu0 0.0
        %481 = vmatprep.subr.mxu0 0.0
        %482 = vmatpush1.msra.mxu0 0.0
        %483 = vmatprep.subr.mxu0 0.0
        %484 = vmatpush1.msra.mxu0 0.0
        %485 = vmatprep.subr.mxu0 0.0
        %486 = vmatpush1.msra.mxu0 0.0
        %487 = vmatprep.subr.mxu0 0.0
        %488 = vmatpush1.msra.mxu0 0.0
        %489 = vmatprep.subr.mxu0 0.0
        %490 = vmatpush1.msra.mxu0 0.0
        %491 = vmatprep.subr.mxu0 0.0
        %492 = vmatpush1.msra.mxu0 0.0
        %493 = vmatprep.subr.mxu0 0.0
        %494 = vmatpush1.msra.mxu0 0.0
        %495 = vmatprep.mubr.f32.mxu0 0.0
        %496 = vmatmul.mubr.f32.gmra.mrb[0].mxu0 %v429
        %v497 = vpop.f32.mrb[0].mxu0
        %v498 = vadd.f32 0.0, %v497
        %v499 = vpop.f32.mrb[0].mxu0
        %500 = vdwg.mxu0
        %v501 = vlaneseq
        %v502 = vshrl.u32 %v501, 7
        %v503 = vsub.s32 0, %v502
        %v504 = vrot.slane %v498, %v503
        %506 = vrot.lane.b32.xlu0 %v504, 4
        %v507 = vpop.permute.xlu0 %506
        %v509 = vadd.f32 %v288, %v507
        %v510 = vadd.f32 %v285, %v507
        %513 = vrot.lane.b32.xlu0 %v509, 124
        %v514 = vpop.permute.xlu0 %513
        %515 = vrot.lane.b32.xlu0 %v510, 124
        %v516 = vpop.permute.xlu0 %515
        %v517 = vsel %vm303, %v514, %v516
        %519 = vst [vmem:[%s256] sm:$0xf] %v517
        %520 = vst [vmem:[%s262 - $0x1] sm:$0x2] %v498
        %s521 = sand.u32 %s141, 1
        %s522 = scalar_lea.sflag [#allocation3], %s521
        %s523 = sand.u32 %s141, 1
        %s524 = smul.addr %s523, 4
        %s525 = scalar_lea.vmem [#allocation2], %s524
        %s526 = sand.u32 %s169, 1
        %s527 = scalar_lea.sflag [#allocation5], %s526
        %s528 = sand.u32 %s169, 1
        %s529 = scalar_lea.vmem [#allocation4], %s528
        // Predicated region
        $region37: #{tpu_custom_call.1} parent=35 // pred_check
          %p530 = pneg %p151
        $region38: #{tpu_custom_call.1} parent=35 // pred_check_branch
          %532 = sbr.rel (%p530) target = $region40
        $region39: #{tpu_custom_call.1} parent=35 // pred_region
          %s534 = ssub.s32 64, 64
          %535 = vsyncadd %s522, %s534
          %s536 = sadd.s32 %s28, %s27
          %s537 = smul.addr %s536, 64
          %s538 = scalar_lea.hbm %s4, %s537
          %s540 = sshll.u32 %s525, 4
          %s541 = int_to_ptr.vmem [resolvable:$true] %s540
          %543 = dma.vmem_to_hbm [thread:$0]  %s541, 64, %s538, %s522
        $region40: #{tpu_custom_call.1} parent=35 // pred_fallthru
          _
        // Predicated region
        $region41: #{tpu_custom_call.1} parent=35 // pred_check
          %p544 = pneg %p179
        $region42: #{tpu_custom_call.1} parent=35 // pred_check_branch
          %546 = sbr.rel (%p544) target = $region44
        $region43: #{tpu_custom_call.1} parent=35 // pred_region
          %s548 = ssub.s32 16, 16
          %549 = vsyncadd %s527, %s548
          %s550 = sadd.s32 %s28, %s27
          %s551 = smul.addr %s550, 16
          %s552 = scalar_lea.hbm %s5, %s551
          %s554 = sshll.u32 %s529, 4
          %s555 = int_to_ptr.vmem [resolvable:$true] %s554
          %557 = dma.vmem_to_hbm [thread:$0]  %s555, 16, %s552, %s527
        $region44: #{tpu_custom_call.1} parent=35 // pred_fallthru
          _
      $region36: #{tpu_custom_call.1} parent=5 // pred_fallthru
        _
      %p558 = scmp.le.s32.totalorder 2, %s18
      // Predicated region
      $region45: #{tpu_custom_call.1} parent=5 // pred_check
        %p559 = pneg %p558
      $region46: #{tpu_custom_call.1} parent=5 // pred_check_branch
        %561 = sbr.rel (%p559) target = $region48
      $region47: #{tpu_custom_call.1} parent=5 // pred_region
        %s562 = ssub.s32 %s18, 2
        // Predicated region
        $region49: #{tpu_custom_call.1} parent=47 // pred_check
          %p563 = pneg %p157
        $region50: #{tpu_custom_call.1} parent=47 // pred_check_branch
          %565 = sbr.rel (%p563) target = $region52
        $region51: #{tpu_custom_call.1} parent=47 // pred_region
          %s566 = sand.u32 %s142, 1
          %s567 = scalar_lea.sflag [#allocation3], %s566
          %s568 = sand.u32 %s142, 1
          %s569 = smul.addr %s568, 4
          %s570 = scalar_lea.vmem [#allocation2], %s569
          %571 = dma.done %s567, 64
        $region52: #{tpu_custom_call.1} parent=47 // pred_fallthru
          _
        // Predicated region
        $region53: #{tpu_custom_call.1} parent=47 // pred_check
          %p572 = pneg %p185
        $region54: #{tpu_custom_call.1} parent=47 // pred_check_branch
          %574 = sbr.rel (%p572) target = $region56
        $region55: #{tpu_custom_call.1} parent=47 // pred_region
          %s575 = sand.u32 %s170, 1
          %s576 = scalar_lea.sflag [#allocation5], %s575
          %s577 = sand.u32 %s170, 1
          %s578 = scalar_lea.vmem [#allocation4], %s577
          %579 = dma.done %s576, 16
        $region56: #{tpu_custom_call.1} parent=47 // pred_fallthru
          _
      $region48: #{tpu_custom_call.1} parent=5 // pred_fallthru
        _
    $region6: #{tpu_custom_call.1} parent=1 // loop_footer
      %s22 = sadd.s32 1, %s18
    $region7: #{tpu_custom_call.1} parent=1 // loop_footer_branch
      %17 = sbr.rel target = $region3
    $region8: #{tpu_custom_call.1} parent=1 // loop_exit
      _
    %580 = vsyncpa [#allocation3], 1
    %s581 = scalar_lea.sflag [#allocation3], 1
    %582 = vsyncpa %s581, 1
    %583 = vsyncpa [#allocation5], 1
    %s584 = scalar_lea.sflag [#allocation5], 1
    %585 = vsyncpa %s584, 1

</llo_original>
